<compile_context>
chip_gen: v6e
topology: v6e:2x2x1
jax: 0.10.0
libtpu: 0.0.40
codegen_flags: <defaults>
</compile_context>

<pallas_src>
import functools

import jax
import jax.numpy as jnp
from jax.experimental import pallas as pl
from jax.experimental.pallas import tpu as pltpu


def _accuracy_kernel(n_rows, block_rows, eps, a_ref, p_ref, n_ref, o_ref):
    a = a_ref[...].astype(jnp.float32)                 # (BN, D)
    p = p_ref[...].astype(jnp.float32)
    n = n_ref[...].astype(jnp.float32)

    dp = a - p + eps
    dn = a - n + eps
    # dist_neg > dist_pos  <=>  dist_neg^2 > dist_pos^2  (sqrt is monotone),
    # fused into a single cross-lane reduction (no EUP transcendentals).
    diff = jnp.sum(dn * dn - dp * dp, axis=-1, keepdims=True)      # (BN, 1)

    # Mask rows that are padding in the (ragged) last block.  Keep the
    # logical_and ordering: it neutralizes NaN/Inf garbage in padded rows.
    row = jax.lax.broadcasted_iota(jnp.int32, diff.shape, 0)
    row = row + pl.program_id(0) * block_rows
    valid = row < n_rows

    correct = jnp.where(jnp.logical_and(diff > 0.0, valid), 1.0, 0.0)
    partial = jnp.sum(correct)                         # scalar count for this tile
    # Lane-dense write of the per-block partial; wrapper reads [:, 0, 0].
    o_ref[...] = jnp.broadcast_to(partial, o_ref.shape).astype(jnp.float32)


def _vmem_budget():
    """(double-buffer budget bytes, scoped vmem_limit_bytes) per chip gen."""
    try:
        kind = jax.devices()[0].device_kind.lower()
    except Exception:  # pragma: no cover - defensive
        kind = ""
    if "v7" in kind:
        # v7x: only 64 MiB physical VMEM -> leave headroom for output + scratch.
        return 24 * 1024 * 1024, 32 * 1024 * 1024
    if any(("v%d" % g) in kind for g in (2, 3, 4, 5, 6)):
        # 128 MiB physical VMEM: raise the scoped limit and fill a bigger budget
        # so large-D shapes keep multi-MiB blocks.
        return 48 * 1024 * 1024, 64 * 1024 * 1024
    # Unknown device kind: stay conservative.
    return 24 * 1024 * 1024, 32 * 1024 * 1024


def _choose_block_rows(n_rows, d, itemsize, budget_bytes):
    # 3 pipelined inputs x 2 buffers x (BN x D x itemsize) must fit the budget.
    # No artificial row cap: fill the budget so each grid step is multi-MiB.
    max_bn = budget_bytes // (3 * 2 * max(d, 1) * max(itemsize, 1))
    bn = max(8, (max_bn // 8) * 8)                     # keep sublane-aligned
    if bn >= n_rows:
        return n_rows                                  # one full-extent block (always legal)
    return bn


def accuracy(anchor, positive, negative, *, eps=1e-6, block_rows=None):
    """Triplet accuracy: fraction of rows with ||a-n+eps|| > ||a-p+eps||. Returns f32 scalar."""
    n_rows, d = anchor.shape
    itemsize = jnp.dtype(anchor.dtype).itemsize
    budget_bytes, vmem_limit_bytes = _vmem_budget()

    if block_rows is None:
        block_rows = _choose_block_rows(n_rows, d, itemsize, budget_bytes)
        # v7x has 2 TensorCores: make sure the "parallel" axis has >= 2 blocks
        # when the batch allows it (neutral on single-TC v5e/v6e).
        if block_rows >= n_rows and n_rows > 8:
            block_rows = max(8, ((n_rows // 2) // 8) * 8)

    num_blocks = pl.cdiv(n_rows, block_rows)

    in_spec = pl.BlockSpec((block_rows, d), lambda i: (i, 0))
    out_spec = pl.BlockSpec((1, 8, 128), lambda i: (i, 0, 0))

    cost = pl.CostEstimate(
        flops=8 * n_rows * d,
        transcendentals=0,
        bytes_accessed=3 * n_rows * d * itemsize + num_blocks * 8 * 128 * 4,
    )

    partials = pl.pallas_call(
        functools.partial(_accuracy_kernel, n_rows, block_rows, float(eps)),
        out_shape=jax.ShapeDtypeStruct((num_blocks, 8, 128), jnp.float32),
        grid=(num_blocks,),
        in_specs=[in_spec, in_spec, in_spec],
        out_specs=out_spec,
        compiler_params=pltpu.CompilerParams(
            dimension_semantics=("parallel",),
            vmem_limit_bytes=vmem_limit_bytes,
        ),
        cost_estimate=cost,
    )(anchor, positive, negative)

    return jnp.sum(partials[:, 0, 0]) / jnp.float32(n_rows)


def _reference(anchor, positive, negative, eps=1e-6):
    a = anchor.astype(jnp.float32)
    p = positive.astype(jnp.float32)
    n = negative.astype(jnp.float32)
    dp = jnp.sqrt(jnp.sum((a - p + eps) ** 2, axis=-1))
    dn = jnp.sqrt(jnp.sum((a - n + eps) ** 2, axis=-1))
    return jnp.sum((dn - dp > 0.0).astype(jnp.float32)) / anchor.shape[0]


if __name__ == "__main__":
    keys = jax.random.split(jax.random.PRNGKey(0), 9)

    # Case 1: auto block sizing; batch split into >= 2 blocks for v7x's 2 TCs.
    N, D = 16, 32
    anchor = jax.random.normal(keys[0], (N, D), dtype=jnp.float32)
    positive = anchor + 0.1 * jax.random.normal(keys[1], (N, D), dtype=jnp.float32)
    negative = jax.random.normal(keys[2], (N, D), dtype=jnp.float32)

    acc = jax.block_until_ready(accuracy(anchor, positive, negative))
    ref = _reference(anchor, positive, negative)
    assert jnp.allclose(acc, ref, rtol=1e-6, atol=1e-6), (acc, ref)

    # Case 2: multi-block grid with a ragged (padded, masked) last block.
    N2, D2 = 20, 32
    a2 = jax.random.normal(keys[3], (N2, D2), dtype=jnp.float32)
    p2 = a2 + 0.1 * jax.random.normal(keys[4], (N2, D2), dtype=jnp.float32)
    n2 = jax.random.normal(keys[5], (N2, D2), dtype=jnp.float32)

    acc2 = jax.block_until_ready(accuracy(a2, p2, n2, block_rows=8))
    ref2 = _reference(a2, p2, n2)
    assert jnp.allclose(acc2, ref2, rtol=1e-6, atol=1e-6), (acc2, ref2)

    # Case 3: bf16 inputs passed straight through (no wrapper-side upcast).
    N3, D3 = 24, 32
    a3 = jax.random.normal(keys[6], (N3, D3), dtype=jnp.float32).astype(jnp.bfloat16)
    p3 = (a3.astype(jnp.float32)
          + 0.1 * jax.random.normal(keys[7], (N3, D3), dtype=jnp.float32)).astype(jnp.bfloat16)
    n3 = jax.random.normal(keys[8], (N3, D3), dtype=jnp.float32).astype(jnp.bfloat16)

    acc3 = jax.block_until_ready(accuracy(a3, p3, n3))
    ref3 = _reference(a3, p3, n3)
    assert jnp.allclose(acc3, ref3, rtol=1e-6, atol=1e-6), (acc3, ref3)

    print("KERNEL_OK")
</pallas_src>

<mosaic_0001>
module attributes {stable_mosaic.version = 11 : i64} {
  func.func @_accuracy_kernel(%arg0: i32, %arg1: memref<8x32xf32, #tpu.memory_space<vmem>>, %arg2: memref<8x32xf32, #tpu.memory_space<vmem>>, %arg3: memref<8x32xf32, #tpu.memory_space<vmem>>, %arg4: memref<1x8x128xf32, #tpu.memory_space<vmem>>) attributes {dimension_semantics = [#tpu.dimension_semantics<parallel>], iteration_bounds = array<i64: 2>, scalar_prefetch = 0 : i64, scratch_operands = 0 : i64, tpu.core_type = #tpu.core_type<tc>, window_params = [{transform_indices = @transform_0, window_bounds = array<i64: 8, 32>}, {transform_indices = @transform_1, window_bounds = array<i64: 8, 32>}, {transform_indices = @transform_2, window_bounds = array<i64: 8, 32>}, {transform_indices = @transform_3, window_bounds = array<i64: 1, 8, 128>}]} {
    %c0 = arith.constant 0 : index
    %c0_0 = arith.constant 0 : index
    %0 = vector.load %arg1[%c0, %c0_0] : memref<8x32xf32, #tpu.memory_space<vmem>>, vector<8x32xf32>
    %c0_1 = arith.constant 0 : index
    %c0_2 = arith.constant 0 : index
    %1 = vector.load %arg2[%c0_1, %c0_2] : memref<8x32xf32, #tpu.memory_space<vmem>>, vector<8x32xf32>
    %c0_3 = arith.constant 0 : index
    %c0_4 = arith.constant 0 : index
    %2 = vector.load %arg3[%c0_3, %c0_4] : memref<8x32xf32, #tpu.memory_space<vmem>>, vector<8x32xf32>
    %3 = arith.subf %0, %1 : vector<8x32xf32>
    %cst = arith.constant 9.99999997E-7 : f32
    %4 = vector.broadcast %cst : f32 to vector<8x32xf32>
    %5 = arith.addf %3, %4 : vector<8x32xf32>
    %6 = arith.subf %0, %2 : vector<8x32xf32>
    %cst_5 = arith.constant 9.99999997E-7 : f32
    %7 = vector.broadcast %cst_5 : f32 to vector<8x32xf32>
    %8 = arith.addf %6, %7 : vector<8x32xf32>
    %9 = arith.mulf %8, %8 : vector<8x32xf32>
    %10 = arith.mulf %5, %5 : vector<8x32xf32>
    %11 = arith.subf %9, %10 : vector<8x32xf32>
    %cst_6 = arith.constant dense<0.000000e+00> : vector<8xf32>
    %12 = vector.multi_reduction <add>, %11, %cst_6 [1] : vector<8x32xf32> to vector<8xf32>
    %13 = vector.shape_cast %12 : vector<8xf32> to vector<8x1xf32>
    %14 = tpu.iota {dimensions = array<i32: 0>} : vector<8x1xi32>
    %c8_i32 = arith.constant 8 : i32
    %15 = arith.muli %arg0, %c8_i32 : i32
    %16 = vector.broadcast %15 : i32 to vector<8x1xi32>
    %17 = arith.addi %14, %16 : vector<8x1xi32>
    %c16_i32 = arith.constant 16 : i32
    %18 = vector.broadcast %c16_i32 : i32 to vector<8x1xi32>
    %19 = arith.cmpi slt, %17, %18 : vector<8x1xi32>
    %cst_7 = arith.constant 0.000000e+00 : f32
    %20 = vector.broadcast %cst_7 : f32 to vector<8x1xf32>
    %21 = arith.cmpf ogt, %13, %20 : vector<8x1xf32>
    %22 = arith.andi %21, %19 : vector<8x1xi1>
    %cst_8 = arith.constant 1.000000e+00 : f32
    %cst_9 = arith.constant 0.000000e+00 : f32
    %23 = vector.broadcast %cst_8 : f32 to vector<8x1xf32>
    %24 = vector.broadcast %cst_9 : f32 to vector<8x1xf32>
    %25 = arith.select %22, %23, %24 : vector<8x1xi1>, vector<8x1xf32>
    %26 = vector.shape_cast %25 : vector<8x1xf32> to vector<1x8x1xf32>
    %cst_10 = arith.constant dense<0.000000e+00> : vector<1xf32>
    %27 = vector.multi_reduction <add>, %26, %cst_10 [1, 2] : vector<1x8x1xf32> to vector<1xf32>
    %28 = vector.shape_cast %27 : vector<1xf32> to vector<1x1x1xf32>
    %29 = vector.extract %28[0, 0, 0] : f32 from vector<1x1x1xf32>
    %30 = vector.broadcast %29 : f32 to vector<1x8x128xf32>
    %c0_11 = arith.constant 0 : index
    %c0_12 = arith.constant 0 : index
    %c0_13 = arith.constant 0 : index
    %31 = vector.load %arg4[%c0_11, %c0_12, %c0_13] : memref<1x8x128xf32, #tpu.memory_space<vmem>>, vector<1x8x128xf32>
    tpu.vector_store %arg4[%c0_11, %c0_12, %c0_13], %30 {strides = array<i32>} : memref<1x8x128xf32, #tpu.memory_space<vmem>>, vector<1x8x128xf32>,
    return
  }
  func.func @transform_0(%arg0: i32) -> (i32, i32) {
    %c0_i32 = arith.constant 0 : i32
    %c0_i32_0 = arith.constant 0 : i32
    return %arg0, %c0_i32 : i32, i32
  }
  func.func @transform_1(%arg0: i32) -> (i32, i32) {
    %c0_i32 = arith.constant 0 : i32
    %c0_i32_0 = arith.constant 0 : i32
    return %arg0, %c0_i32 : i32, i32
  }
  func.func @transform_2(%arg0: i32) -> (i32, i32) {
    %c0_i32 = arith.constant 0 : i32
    %c0_i32_0 = arith.constant 0 : i32
    return %arg0, %c0_i32 : i32, i32
  }
  func.func @transform_3(%arg0: i32) -> (i32, i32, i32) {
    %c0_i32 = arith.constant 0 : i32
    %c0_i32_0 = arith.constant 0 : i32
    %c0_i32_1 = arith.constant 0 : i32
    return %arg0, %c0_i32, %c0_i32_0 : i32, i32, i32
  }
}

</mosaic_0001>

<llo_original>
// kernel: tpu_custom_call.1
$region0: #{tpu_custom_call.1}
  #allocation0 [shape = 'u32[]', space=smem, size = 0x4, offset = 0x4, fixed_abs, tag = 'smem constant byte address 0x4 - core index']
  #allocation1 [shape = 'u32[144,128]{1,0:T(1,128)}', space=vmem, size = 0x12000, scoped, tag = 'internal scratch']
  %s0 = inlined_call_operand.hbm [shape: f32[16,32], index: 0, kind: input, shape index: {}]
  %s1 = inlined_call_operand.hbm [shape: f32[16,32], index: 1, kind: input, shape index: {}]
  %s2 = inlined_call_operand.hbm [shape: f32[16,32], index: 2, kind: input, shape index: {}]
  %s3 = inlined_call_operand.hbm [shape: f32[2,8,128], index: 3, kind: output, shape index: {}]
  %s4 = sld [smem:[#allocation0]]
  $region57: #{tpu_custom_call.1} parent=0
    _
  %s6 = ssub.s32 1, %s4
  %s7 = scalar_select 0, %s6, %s4
  $region1: #{tpu_custom_call.1} parent=0
    #allocation2 [shape = 'u8[8192]{0}', space=vmem, size = 0x2000, scoped, tag = 'input window, operand 0']
    #allocation3 [shape = 's32[2]{0}', space=sflag, size = 0x8, scoped, tag = 'scoped memory for tpu_custom_call.1']
    #allocation4 [shape = 's32[2]{0}', space=sflag, size = 0x8, scoped, tag = 'scoped memory for tpu_custom_call.1']
    #allocation5 [shape = 'u8[8192]{0}', space=vmem, size = 0x2000, scoped, tag = 'input window, operand 1']
    #allocation6 [shape = 's32[2]{0}', space=sflag, size = 0x8, scoped, tag = 'scoped memory for tpu_custom_call.1']
    #allocation7 [shape = 'u8[8192]{0}', space=vmem, size = 0x2000, scoped, tag = 'input window, operand 2']
    #allocation8 [shape = 'u8[8192]{0}', space=vmem, size = 0x2000, scoped, tag = 'output window, operand 0']
    %8 = vsyncpa [#allocation3], 0
    %s9 = scalar_lea.sflag [#allocation3], 1
    %10 = vsyncpa %s9, 0
    %11 = vsyncpa [#allocation6], 0
    %s12 = scalar_lea.sflag [#allocation6], 1
    %13 = vsyncpa %s12, 0
    %14 = vsyncpa [#allocation4], 0
    %s15 = scalar_lea.sflag [#allocation4], 1
    %16 = vsyncpa %s15, 0
    loop: start=0, step=1, limit=4
    $region2: #{tpu_custom_call.1} parent=1 // loop_pre_header
      _
    $region3: #{tpu_custom_call.1} parent=1 // loop_header
      %s18 = sphi 0, %s22
      %p19 = scmp.ge.s32.totalorder %s18, 4
      %s28 = sphi 0, %s30
      %s31 = sphi 0, %s28
      %s32 = sphi 0, %s31
      %s48 = sphi 0, %s32
      %s54 = sphi 0, %s56
      %s57 = sphi 0, %s54
      %s58 = sphi 0, %s57
      %s74 = sphi 0, %s58
      %s80 = sphi 0, %s82
      %s83 = sphi 0, %s80
      %s84 = sphi 0, %s83
      %s100 = sphi 0, %s84
      %s106 = sphi 0, %s108
      %s109 = sphi 0, %s106
      %s110 = sphi 0, %s109
      %s126 = sphi 0, %s110
    $region4: #{tpu_custom_call.1} parent=1 // loop_header_branch
      %21 = sbr.rel (%p19) target = $region8
    $region5: #{tpu_custom_call.1} parent=1 // loop_body
      %s23 = ssub.s32 %s18, 1
      %s24 = ssub.s32 %s18, 2
      %s25 = sadd.s32 %s18, 1
      %s26 = ssub.s32 %s18, %s25
      %p27 = scmp.eq.s32.totalorder %s26, 0
      %s29 = sadd.s32 %s28, 1
      %s30 = scalar_select %p27, %s28, %s29
      %p33 = pneg %p27
      %p34 = scmp.eq.s32.totalorder %s18, 1
      %p35 = por %p33, %p34
      %p36 = scmp.ne.s32.totalorder %s28, %s31
      %p37 = scmp.eq.s32.totalorder %s18, 0
      %p38 = por %p36, %p37
      %p39 = scmp.ne.s32.totalorder %s28, %s31
      %p40 = scmp.eq.s32.totalorder %s23, 1
      %p41 = por %p39, %p40
      %p42 = scmp.ne.s32.totalorder %s31, %s32
      %p43 = scmp.eq.s32.totalorder %s23, 0
      %p44 = por %p42, %p43
      %p45 = scmp.ne.s32.totalorder %s31, %s32
      %p46 = scmp.eq.s32.totalorder %s24, 1
      %p47 = por %p45, %p46
      %p49 = scmp.ne.s32.totalorder %s32, %s48
      %p50 = scmp.eq.s32.totalorder %s24, 0
      %p51 = por %p49, %p50
      %s52 = ssub.s32 %s18, %s25
      %p53 = scmp.eq.s32.totalorder %s52, 0
      %s55 = sadd.s32 %s54, 1
      %s56 = scalar_select %p53, %s54, %s55
      %p59 = pneg %p53
      %p60 = scmp.eq.s32.totalorder %s18, 1
      %p61 = por %p59, %p60
      %p62 = scmp.ne.s32.totalorder %s54, %s57
      %p63 = scmp.eq.s32.totalorder %s18, 0
      %p64 = por %p62, %p63
      %p65 = scmp.ne.s32.totalorder %s54, %s57
      %p66 = scmp.eq.s32.totalorder %s23, 1
      %p67 = por %p65, %p66
      %p68 = scmp.ne.s32.totalorder %s57, %s58
      %p69 = scmp.eq.s32.totalorder %s23, 0
      %p70 = por %p68, %p69
      %p71 = scmp.ne.s32.totalorder %s57, %s58
      %p72 = scmp.eq.s32.totalorder %s24, 1
      %p73 = por %p71, %p72
      %p75 = scmp.ne.s32.totalorder %s58, %s74
      %p76 = scmp.eq.s32.totalorder %s24, 0
      %p77 = por %p75, %p76
      %s78 = ssub.s32 %s18, %s25
      %p79 = scmp.eq.s32.totalorder %s78, 0
      %s81 = sadd.s32 %s80, 1
      %s82 = scalar_select %p79, %s80, %s81
      %p85 = pneg %p79
      %p86 = scmp.eq.s32.totalorder %s18, 1
      %p87 = por %p85, %p86
      %p88 = scmp.ne.s32.totalorder %s80, %s83
      %p89 = scmp.eq.s32.totalorder %s18, 0
      %p90 = por %p88, %p89
      %p91 = scmp.ne.s32.totalorder %s80, %s83
      %p92 = scmp.eq.s32.totalorder %s23, 1
      %p93 = por %p91, %p92
      %p94 = scmp.ne.s32.totalorder %s83, %s84
      %p95 = scmp.eq.s32.totalorder %s23, 0
      %p96 = por %p94, %p95
      %p97 = scmp.ne.s32.totalorder %s83, %s84
      %p98 = scmp.eq.s32.totalorder %s24, 1
      %p99 = por %p97, %p98
      %p101 = scmp.ne.s32.totalorder %s84, %s100
      %p102 = scmp.eq.s32.totalorder %s24, 0
      %p103 = por %p101, %p102
      %s104 = ssub.s32 %s18, %s25
      %p105 = scmp.eq.s32.totalorder %s104, 0
      %s107 = sadd.s32 %s106, 1
      %s108 = scalar_select %p105, %s106, %s107
      %p111 = pneg %p105
      %p112 = scmp.eq.s32.totalorder %s18, 1
      %p113 = por %p111, %p112
      %p114 = scmp.ne.s32.totalorder %s106, %s109
      %p115 = scmp.eq.s32.totalorder %s18, 0
      %p116 = por %p114, %p115
      %p117 = scmp.ne.s32.totalorder %s106, %s109
      %p118 = scmp.eq.s32.totalorder %s23, 1
      %p119 = por %p117, %p118
      %p120 = scmp.ne.s32.totalorder %s109, %s110
      %p121 = scmp.eq.s32.totalorder %s23, 0
      %p122 = por %p120, %p121
      %p123 = scmp.ne.s32.totalorder %s109, %s110
      %p124 = scmp.eq.s32.totalorder %s24, 1
      %p125 = por %p123, %p124
      %p127 = scmp.ne.s32.totalorder %s110, %s126
      %p128 = scmp.eq.s32.totalorder %s24, 0
      %p129 = por %p127, %p128
      %p130 = scmp.le.s32.totalorder 1, %s18
      %p131 = scmp.lt.s32.totalorder %s18, 3
      %p132 = pnand %p130, %p131
      %p133 = pneg %p132
      // Predicated region
      $region9: #{tpu_custom_call.1} parent=5 // pred_check
        _
      $region10: #{tpu_custom_call.1} parent=5 // pred_check_branch
        %135 = sbr.rel (%p132) target = $region12
      $region11: #{tpu_custom_call.1} parent=5 // pred_region
        %s136 = ssub.s32 %s18, 1
      $region12: #{tpu_custom_call.1} parent=5 // pred_fallthru
        _
      %p137 = scmp.lt.s32.totalorder %s18, 2
      // Predicated region
      $region13: #{tpu_custom_call.1} parent=5 // pred_check
        %p138 = pneg %p137
      $region14: #{tpu_custom_call.1} parent=5 // pred_check_branch
        %140 = sbr.rel (%p138) target = $region16
      $region15: #{tpu_custom_call.1} parent=5 // pred_region
        // Predicated region
        $region17: #{tpu_custom_call.1} parent=15 // pred_check
          %p141 = pneg %p38
        $region18: #{tpu_custom_call.1} parent=15 // pred_check_branch
          %143 = sbr.rel (%p141) target = $region20
        $region19: #{tpu_custom_call.1} parent=15 // pred_region
          %s144 = sand.u32 %s28, 1
          %s145 = scalar_lea.sflag [#allocation3], %s144
          %s146 = sand.u32 %s28, 1
          %s147 = smul.addr %s146, 8
          %s148 = scalar_lea.vmem [#allocation2], %s147
          %s150 = ssub.s32 128, 128
          %151 = vsyncadd %s145, %s150
          %s152 = smul.addr %s18, 128
          %s153 = scalar_lea.hbm %s0, %s152
          %s155 = sshll.u32 %s148, 4
          %s156 = int_to_ptr.vmem [resolvable:$true] %s155
          %158 = dma.hbm_to_vmem [thread:$0]  %s153, 128, %s156, %s145
        $region20: #{tpu_custom_call.1} parent=15 // pred_fallthru
          _
        // Predicated region
        $region21: #{tpu_custom_call.1} parent=15 // pred_check
          %p159 = pneg %p64
        $region22: #{tpu_custom_call.1} parent=15 // pred_check_branch
          %161 = sbr.rel (%p159) target = $region24
        $region23: #{tpu_custom_call.1} parent=15 // pred_region
          %s162 = sand.u32 %s18, 1
          %s163 = scalar_lea.sflag [#allocation6], %s162
          %s164 = sand.u32 %s54, 1
          %s165 = smul.addr %s164, 8
          %s166 = scalar_lea.vmem [#allocation5], %s165
          %s168 = ssub.s32 128, 128
          %169 = vsyncadd %s163, %s168
          %s170 = smul.addr %s18, 128
          %s171 = scalar_lea.hbm %s1, %s170
          %s173 = sshll.u32 %s166, 4
          %s174 = int_to_ptr.vmem [resolvable:$true] %s173
          %176 = dma.hbm_to_vmem [thread:$0]  %s171, 128, %s174, %s163
        $region24: #{tpu_custom_call.1} parent=15 // pred_fallthru
          _
        // Predicated region
        $region25: #{tpu_custom_call.1} parent=15 // pred_check
          %p177 = pneg %p90
        $region26: #{tpu_custom_call.1} parent=15 // pred_check_branch
          %179 = sbr.rel (%p177) target = $region28
        $region27: #{tpu_custom_call.1} parent=15 // pred_region
          %s180 = sand.u32 %s18, 1
          %s181 = scalar_lea.sflag [#allocation6], %s180
          %s182 = sand.u32 %s80, 1
          %s183 = smul.addr %s182, 8
          %s184 = scalar_lea.vmem [#allocation7], %s183
          %s186 = ssub.s32 128, 128
          %187 = vsyncadd %s181, %s186
          %s188 = smul.addr %s18, 128
          %s189 = scalar_lea.hbm %s2, %s188
          %s191 = sshll.u32 %s184, 4
          %s192 = int_to_ptr.vmem [resolvable:$true] %s191
          %194 = dma.hbm_to_vmem [thread:$0]  %s189, 128, %s192, %s181
        $region28: #{tpu_custom_call.1} parent=15 // pred_fallthru
          _
      $region16: #{tpu_custom_call.1} parent=5 // pred_fallthru
        _
      %p195 = scmp.le.s32.totalorder 1, %s18
      %p196 = scmp.lt.s32.totalorder %s18, 3
      %p197 = pnand %p195, %p196
      %p198 = pneg %p197
      // Predicated region
      $region29: #{tpu_custom_call.1} parent=5 // pred_check
        _
      $region30: #{tpu_custom_call.1} parent=5 // pred_check_branch
        %200 = sbr.rel (%p197) target = $region32
      $region31: #{tpu_custom_call.1} parent=5 // pred_region
        %s201 = ssub.s32 %s18, 1
        %s202 = sand.u32 %s31, 1
        %s203 = scalar_lea.sflag [#allocation3], %s202
        %s204 = sand.u32 %s31, 1
        %s205 = smul.addr %s204, 8
        %s206 = scalar_lea.vmem [#allocation2], %s205
        // Predicated region
        $region33: #{tpu_custom_call.1} parent=31 // pred_check
          %p207 = pneg %p44
        $region34: #{tpu_custom_call.1} parent=31 // pred_check_branch
          %209 = sbr.rel (%p207) target = $region36
        $region35: #{tpu_custom_call.1} parent=31 // pred_region
          %210 = dma.done %s203, 128
        $region36: #{tpu_custom_call.1} parent=31 // pred_fallthru
          _
        %s211 = sand.u32 %s23, 1
        %s212 = scalar_lea.sflag [#allocation6], %s211
        %s213 = sand.u32 %s57, 1
        %s214 = smul.addr %s213, 8
        %s215 = scalar_lea.vmem [#allocation5], %s214
        // Predicated region
        $region37: #{tpu_custom_call.1} parent=31 // pred_check
          %p216 = pneg %p70
        $region38: #{tpu_custom_call.1} parent=31 // pred_check_branch
          %218 = sbr.rel (%p216) target = $region40
        $region39: #{tpu_custom_call.1} parent=31 // pred_region
          %219 = dma.done %s212, 128
        $region40: #{tpu_custom_call.1} parent=31 // pred_fallthru
          _
        %s220 = sand.u32 %s23, 1
        %s221 = scalar_lea.sflag [#allocation6], %s220
        %s222 = sand.u32 %s83, 1
        %s223 = smul.addr %s222, 8
        %s224 = scalar_lea.vmem [#allocation7], %s223
        // Predicated region
        $region41: #{tpu_custom_call.1} parent=31 // pred_check
          %p225 = pneg %p96
        $region42: #{tpu_custom_call.1} parent=31 // pred_check_branch
          %227 = sbr.rel (%p225) target = $region44
        $region43: #{tpu_custom_call.1} parent=31 // pred_region
          %228 = dma.done %s221, 128
        $region44: #{tpu_custom_call.1} parent=31 // pred_fallthru
          _
        %s229 = sand.u32 %s31, 1
        %s230 = scalar_lea.sflag [#allocation3], %s229
        %s231 = sand.u32 %s31, 1
        %s232 = smul.addr %s231, 8
        %s233 = scalar_lea.vmem [#allocation2], %s232
        %p234 = pneg %p44
        %p235 = pneg %p41
        %s236 = sand.u32 %s23, 1
        %s237 = scalar_lea.sflag [#allocation6], %s236
        %s238 = sand.u32 %s57, 1
        %s239 = smul.addr %s238, 8
        %s240 = scalar_lea.vmem [#allocation5], %s239
        %p241 = pneg %p70
        %p242 = pneg %p67
        %s243 = sand.u32 %s23, 1
        %s244 = scalar_lea.sflag [#allocation6], %s243
        %s245 = sand.u32 %s83, 1
        %s246 = smul.addr %s245, 8
        %s247 = scalar_lea.vmem [#allocation7], %s246
        %p248 = pneg %p96
        %p249 = pneg %p93
        %p250 = pneg %p122
        %p251 = pneg %p119
        %s252 = sand.u32 %s109, 1
        %s253 = scalar_lea.sflag [#allocation4], %s252
        %s254 = sand.u32 %s109, 1
        %s255 = smul.addr %s254, 8
        %s256 = scalar_lea.vmem [#allocation8], %s255
        %v257 = vld [vmem:[%s206] sm:$0xff]
        %v258 = vld [vmem:[%s215] sm:$0xff]
        %v259 = vld [vmem:[%s224] sm:$0xff]
        %v260 = vsub.f32 %v257, %v258
        %v261 = vadd.f32 %v260, 1e-06
        %v262 = vsub.f32 %v257, %v259
        %v263 = vadd.f32 %v262, 1e-06
        %v264 = vmul.f32 %v263, %v263
        %v265 = vmul.f32 %v261, %v261
        %v266 = vsub.f32 %v264, %v265
        %vm267 = vcmask 261120
        %v268 = vsel %vm267, %v266, 0.0
        %269 = vadd.xlane.f32.xlu0 %v268
        %v270 = vpop.xlane.xlu0 %269
        %v271 = vlaneseq
        %v272 = vshrl.u32 %v271, 7
        %s273 = smul.u32 %s23, 8
        %v274 = vstv %s273
        %v275 = vadd.s32 %v272, %v274
        %vm276 = vcmp.lt.s32.totalorder %v275, 16
        %vm277 = vcmp.gt.f32.partialorder %v270, 0.0
        %vm278 = vmand %vm277, %vm276
        %v279 = vsel %vm278, 1.0, 0.0
        %vm280 = vcmask 7168
        %v281 = vsel %vm280, %v279, 0.0
        %282 = vadd.xlane.f32.xlu0 %v281
        %v283 = vpop.xlane.xlu0 %282
        %v284 = vrot.slane %v283, 4
        %v285 = vadd.f32 %v283, %v284
        %v286 = vrot.slane %v285, 2
        %v287 = vadd.f32 %v285, %v286
        %v288 = vrot.slane %v287, 1
        %v289 = vadd.f32 %v287, %v288
        %s290 = vtos %v289
        %v291 = vstv %s290
        %292 = vst [vmem:[%s256] sm:$0xff] %v291
        %s293 = sand.u32 %s109, 1
        %s294 = scalar_lea.sflag [#allocation4], %s293
        %s295 = sand.u32 %s109, 1
        %s296 = smul.addr %s295, 8
        %s297 = scalar_lea.vmem [#allocation8], %s296
        // Predicated region
        $region45: #{tpu_custom_call.1} parent=31 // pred_check
          %p298 = pneg %p119
        $region46: #{tpu_custom_call.1} parent=31 // pred_check_branch
          %300 = sbr.rel (%p298) target = $region48
        $region47: #{tpu_custom_call.1} parent=31 // pred_region
          %s302 = ssub.s32 128, 128
          %303 = vsyncadd %s294, %s302
          %s304 = smul.addr %s23, 128
          %s305 = scalar_lea.hbm %s3, %s304
          %s307 = sshll.u32 %s297, 4
          %s308 = int_to_ptr.vmem [resolvable:$true] %s307
          %310 = dma.vmem_to_hbm [thread:$0]  %s308, 128, %s305, %s294
        $region48: #{tpu_custom_call.1} parent=31 // pred_fallthru
          _
      $region32: #{tpu_custom_call.1} parent=5 // pred_fallthru
        _
      %p311 = scmp.le.s32.totalorder 2, %s18
      // Predicated region
      $region49: #{tpu_custom_call.1} parent=5 // pred_check
        %p312 = pneg %p311
      $region50: #{tpu_custom_call.1} parent=5 // pred_check_branch
        %314 = sbr.rel (%p312) target = $region52
      $region51: #{tpu_custom_call.1} parent=5 // pred_region
        %s315 = ssub.s32 %s18, 2
        // Predicated region
        $region53: #{tpu_custom_call.1} parent=51 // pred_check
          %p316 = pneg %p125
        $region54: #{tpu_custom_call.1} parent=51 // pred_check_branch
          %318 = sbr.rel (%p316) target = $region56
        $region55: #{tpu_custom_call.1} parent=51 // pred_region
          %s319 = sand.u32 %s110, 1
          %s320 = scalar_lea.sflag [#allocation4], %s319
          %s321 = sand.u32 %s110, 1
          %s322 = smul.addr %s321, 8
          %s323 = scalar_lea.vmem [#allocation8], %s322
          %324 = dma.done %s320, 128
        $region56: #{tpu_custom_call.1} parent=51 // pred_fallthru
          _
      $region52: #{tpu_custom_call.1} parent=5 // pred_fallthru
        _
    $region6: #{tpu_custom_call.1} parent=1 // loop_footer
      %s22 = sadd.s32 1, %s18
    $region7: #{tpu_custom_call.1} parent=1 // loop_footer_branch
      %17 = sbr.rel target = $region3
    $region8: #{tpu_custom_call.1} parent=1 // loop_exit
      _
    %325 = vsyncpa [#allocation3], 1
    %s326 = scalar_lea.sflag [#allocation3], 1
    %327 = vsyncpa %s326, 1
    %328 = vsyncpa [#allocation6], 1
    %s329 = scalar_lea.sflag [#allocation6], 1
    %330 = vsyncpa %s329, 1
    %331 = vsyncpa [#allocation4], 1
    %s332 = scalar_lea.sflag [#allocation4], 1
    %333 = vsyncpa %s332, 1

</llo_original>
